<compile_context>
chip_gen: v5e
topology: v5e:2x2
jax: 0.10.0
libtpu: 0.0.40
codegen_flags: <defaults>
</compile_context>

<pallas_src>
import math

import jax
import jax.numpy as jnp
from jax.experimental import pallas as pl
from jax.experimental.pallas import tpu as pltpu


def make_evidence_kernel(tau: float, bit_dim: int, out_dtype):
    pos_scale = 1.0 / (tau * bit_dim)   # 1/D from sign.sign^T, 1/tau temperature

    def kernel(sgn_row_ref, sgn_t_ref, w1s_ref, b1_ref, w2t_ref, b2t_ref,
               pos_ref, neg_ref):
        # Row tile of the precomputed +-1 sign matrix (bf16, exact).
        sgn_rows_b = sgn_row_ref[...]                               # (TM, D) bf16

        # posE tile: MXU-native (TM, D) @ (D, N) against the resident transposed
        # sign matrix -> no per-step XLU transpose, f32 accumulation (exact for
        # +-1 inputs).  1/(tau*D) applied as a post-scale.
        s = jnp.dot(sgn_rows_b, sgn_t_ref[...],
                    preferred_element_type=jnp.float32)             # (TM, N) f32
        pos_ref[...] = jnp.exp(jnp.clip(s * pos_scale, -15.0, 15.0)).astype(out_dtype)

        # negE MLP on the row tile.  1/sqrt(D) is folded into w1s and 1/tau into
        # w2t/b2t at trace time; HIGHEST precision keeps it bit-close to the f32
        # reference (no silent bf16 demotion of the f32 weights).
        sgn_rows = sgn_rows_b.astype(jnp.float32)                   # (TM, D) f32
        hid = jnp.dot(sgn_rows, w1s_ref[...],
                      preferred_element_type=jnp.float32,
                      precision=jax.lax.Precision.HIGHEST) + b1_ref[...]  # (TM, 2D)
        hid = jnp.maximum(hid, 0.0)
        # Second layer has output width 1: VPU multiply + XLU lane-reduce
        # instead of a 1-lane-wide MXU matmul.
        neg = jnp.sum(hid * w2t_ref[...], axis=-1, keepdims=True) + b2t_ref[...]
        neg_e = jnp.exp(jnp.clip(neg, -15.0, 15.0))                 # (TM, 1) f32
        # get_abc repeats row i over N consecutive rows: broadcast along lanes so
        # the store is lane-dense rather than a width-1 masked vst.
        # TODO(synk): if the consumer can broadcast lazily, emit negE compacted
        # as (N, 128)-padded instead and drop this N^2 store (halves HBM writes).
        neg_ref[...] = jnp.broadcast_to(neg_e, neg_ref.shape).astype(out_dtype)

    return kernel


def _choose_tm(n: int) -> int:
    """Largest multiple-of-8 divisor of n that is <= 256; prefer >= 2 grid steps
    so both TensorCores get work on v7x."""
    best = None
    for cand in range(min(256, n), 7, -1):
        if cand % 8 == 0 and n % cand == 0:
            best = cand
            break
    if best is None:
        # TODO(synk): pad N up to a multiple of 8 and mask for large ragged
        # batches instead of falling back to a single full-N block.
        return n
    if best == n and (n // 2) % 8 == 0:
        best = n // 2          # guarantee grid >= 2 when 8-row alignment allows
    return best


def _pick_vmem_limit() -> int:
    """~75% of physical VMEM: ~96 MiB on v5e/v6e (128 MiB), ~48 MiB on v7x (64 MiB)."""
    try:
        cap = int(pltpu.get_tpu_info().vmem_capacity_bytes)
    except Exception:
        cap = 64 * 1024 * 1024
    return min(int(cap * 0.75), 100 * 1024 * 1024)


def evidence_net_forward(hash_code, w1, b1, w2, b2, *, tau, tm=None,
                         out_dtype=jnp.float32):
    """hash_code: (N, D) f32; w1: (D, 2D); b1: (1, 2D); w2: (1, 2D); b2: (1, 1).

    Returns (pos_mat, neg_mat), each (N, N) in `out_dtype`:
      pos_mat[i, j] = exp(clamp(<h_i, h_j>/tau, -15, 15))
      neg_mat[i, j] = exp(clamp(MLP(h_i)/tau, -15, 15))   (constant along j)
    Use `to_torch_layout(pos_mat, neg_mat)` only if the exact (N*N, 2) torch
    output layout is required; downstream code should index these directly.
    Set out_dtype=jnp.bfloat16 to halve HBM writes if tolerance allows."""
    n, d = hash_code.shape
    if tm is None:
        tm = _choose_tm(n)
    assert n % tm == 0

    # Precompute the +-1 sign matrix once (exact in bf16), plus its transpose so
    # the Gram matmul inside the kernel is MXU-native with no per-step transpose.
    # TODO(synk): use int8 sign operands on v5e/v6e and float8_e4m3 on v7x when
    # D is large enough for the Gram to be MXU-bound (neutral at small D).
    sgn = jnp.sign(hash_code).astype(jnp.bfloat16)      # (N, D)
    sgn_t = sgn.T                                       # (D, N)

    # Fold STE 1/sqrt(D) into W1 and 1/tau into W2/b2 (trace time, f32).
    w1s = (w1 * jnp.float32(1.0 / math.sqrt(d))).astype(jnp.float32)
    w2t = (w2 * jnp.float32(1.0 / tau)).astype(jnp.float32)
    b2t = (b2 * jnp.float32(1.0 / tau)).astype(jnp.float32)

    # Resident, single-buffered operands: whole array lives in VMEM for the call.
    resident = pl.BlockSpec(memory_space=pltpu.MemorySpace.VMEM)

    kernel = make_evidence_kernel(tau, d, out_dtype)

    pos_mat, neg_mat = pl.pallas_call(
        kernel,
        out_shape=(
            jax.ShapeDtypeStruct((n, n), out_dtype),
            jax.ShapeDtypeStruct((n, n), out_dtype),
        ),
        grid_spec=pltpu.PrefetchScalarGridSpec(
            num_scalar_prefetch=0,
            grid=(n // tm,),
            in_specs=[
                pl.BlockSpec((tm, d), lambda i: (i, 0)),   # pipelined sign row tile
                resident,                                  # sign^T (D, N), Gram RHS
                resident,                                  # w1 / sqrt(D)
                resident,                                  # b1
                resident,                                  # w2 / tau
                resident,                                  # b2 / tau
            ],
            out_specs=[
                pl.BlockSpec((tm, n), lambda i: (i, 0)),   # lane-dense posE rows
                pl.BlockSpec((tm, n), lambda i: (i, 0)),   # lane-dense negE rows
            ],
        ),
        compiler_params=pltpu.CompilerParams(
            dimension_semantics=("parallel",),             # row tiles independent
            vmem_limit_bytes=_pick_vmem_limit(),
        ),
    )(sgn, sgn_t, w1s, b1, w2t, b2t)

    return pos_mat, neg_mat


def to_torch_layout(pos_mat, neg_mat):
    """Optional compatibility glue reproducing torch.cat([posE, negE], dim=1).
    Kept OUT of the fast path: it adds a full extra HBM pass with a 2-wide minor
    dim, so only call it if a consumer truly needs the (N*N, 2) layout."""
    n = pos_mat.shape[0]
    return jnp.stack([pos_mat.reshape(n * n), neg_mat.reshape(n * n)], axis=1)


def _reference(hash_code, w1, b1, w2, b2, tau):
    """Pure-JAX reference mirroring the PyTorch forward (f32, HIGHEST precision)."""
    n, d = hash_code.shape
    hp = jax.lax.Precision.HIGHEST
    h = jnp.sign(hash_code) / jnp.sqrt(jnp.float32(d))
    pos = jnp.exp(jnp.clip(jnp.dot(h, h.T, precision=hp) / tau, -15.0, 15.0))   # (N, N)
    composed = jnp.broadcast_to(h[:, None, :], (n, n, d)).reshape(-1, d)
    hid = jnp.maximum(jnp.dot(composed, w1, precision=hp) + b1, 0.0)
    neg = jnp.dot(hid, w2.T, precision=hp) + b2          # w2 is (1, 2D) torch layout
    neg = jnp.exp(jnp.clip(neg / tau, -15.0, 15.0)).reshape(n, n)
    return pos, neg


if __name__ == "__main__":
    N = 8          # number of hash codes (batch)
    BIT_DIM = 32   # bit_dim
    TAU = 0.5      # tau_coff

    key = jax.random.PRNGKey(0)
    k_x, k_w1, k_b1, k_w2, k_b2 = jax.random.split(key, 5)

    hash_code = jax.random.normal(k_x, (N, BIT_DIM), dtype=jnp.float32)

    # Deterministic parameter init (uniform, torch-Linear-like bounds).
    bound1 = 1.0 / math.sqrt(BIT_DIM)
    w1 = jax.random.uniform(k_w1, (BIT_DIM, 2 * BIT_DIM), jnp.float32, -bound1, bound1)
    b1 = jax.random.uniform(k_b1, (1, 2 * BIT_DIM), jnp.float32, -bound1, bound1)
    bound2 = 1.0 / math.sqrt(2 * BIT_DIM)
    w2 = jax.random.uniform(k_w2, (1, 2 * BIT_DIM), jnp.float32, -bound2, bound2)
    b2 = jax.random.uniform(k_b2, (1, 1), jnp.float32, -bound2, bound2)

    # NOTE: the `acquisition` Linear(bit_dim, bit_dim) in __init__ is never used
    # in forward(), so it is intentionally omitted here.

    pos_mat, neg_mat = evidence_net_forward(hash_code, w1, b1, w2, b2, tau=TAU)
    pos_mat, neg_mat = jax.block_until_ready((pos_mat, neg_mat))

    pos_ref, neg_ref = _reference(hash_code, w1, b1, w2, b2, TAU)
    assert pos_mat.shape == (N, N) and neg_mat.shape == (N, N)
    assert jnp.allclose(pos_mat, pos_ref, rtol=1e-5, atol=1e-5), "posE mismatch"
    assert jnp.allclose(neg_mat, neg_ref, rtol=1e-5, atol=1e-5), "negE mismatch"

    # Torch-layout compatibility check (glue outside the performance path).
    out_torch = to_torch_layout(pos_mat, neg_mat)
    ref_torch = jnp.stack([pos_ref.reshape(-1), neg_ref.reshape(-1)], axis=1)
    assert out_torch.shape == (N * N, 2)
    assert jnp.allclose(out_torch, ref_torch, rtol=1e-5, atol=1e-5), "layout mismatch"

    print("KERNEL_OK")
</pallas_src>

<mosaic_0001>
module attributes {stable_mosaic.version = 11 : i64} {
  func.func @kernel(%arg0: i32, %arg1: memref<8x32xbf16, #tpu.memory_space<vmem>>, %arg2: memref<32x8xbf16, #tpu.memory_space<vmem>>, %arg3: memref<32x64xf32, #tpu.memory_space<vmem>>, %arg4: memref<1x64xf32, #tpu.memory_space<vmem>>, %arg5: memref<1x64xf32, #tpu.memory_space<vmem>>, %arg6: memref<1x1xf32, #tpu.memory_space<vmem>>, %arg7: memref<8x8xf32, #tpu.memory_space<vmem>>, %arg8: memref<8x8xf32, #tpu.memory_space<vmem>>) attributes {dimension_semantics = [#tpu.dimension_semantics<parallel>], iteration_bounds = array<i64: 1>, scalar_prefetch = 0 : i64, scratch_operands = 0 : i64, tpu.core_type = #tpu.core_type<tc>, window_params = [{transform_indices = @transform_0, window_bounds = array<i64: 8, 32>}, {pipeline_mode = #tpu.pipeline_mode<synchronous>, transform_indices = @transform_1, window_bounds = array<i64: 32, 8>}, {pipeline_mode = #tpu.pipeline_mode<synchronous>, transform_indices = @transform_2, window_bounds = array<i64: 32, 64>}, {pipeline_mode = #tpu.pipeline_mode<synchronous>, transform_indices = @transform_3, window_bounds = array<i64: 1, 64>}, {pipeline_mode = #tpu.pipeline_mode<synchronous>, transform_indices = @transform_4, window_bounds = array<i64: 1, 64>}, {pipeline_mode = #tpu.pipeline_mode<synchronous>, transform_indices = @transform_5, window_bounds = array<i64: 1, 1>}, {transform_indices = @transform_6, window_bounds = array<i64: 8, 8>}, {transform_indices = @transform_7, window_bounds = array<i64: 8, 8>}]} {
    %c0 = arith.constant 0 : index
    %c0_0 = arith.constant 0 : index
    %0 = vector.load %arg1[%c0, %c0_0] : memref<8x32xbf16, #tpu.memory_space<vmem>>, vector<8x32xbf16>
    %c0_1 = arith.constant 0 : index
    %c0_2 = arith.constant 0 : index
    %1 = vector.load %arg2[%c0_1, %c0_2] : memref<32x8xbf16, #tpu.memory_space<vmem>>, vector<32x8xbf16>
    %cst = arith.constant dense<0.000000e+00> : vector<8x8xf32>
    %2 = tpu.matmul %0, %1, %cst {dimension_numbers = #tpu.dot_dimension_numbers<[1], [0], [0], [1], [0, 0, 1, 1], [], []>} : vector<8x32xbf16>, vector<32x8xbf16>, vector<8x8xf32> -> vector<8x8xf32>
    %cst_3 = arith.constant 6.250000e-02 : f32
    %3 = vector.broadcast %cst_3 : f32 to vector<8x8xf32>
    %4 = arith.mulf %2, %3 : vector<8x8xf32>
    %cst_4 = arith.constant -1.500000e+01 : f32
    %cst_5 = arith.constant 1.500000e+01 : f32
    %5 = vector.broadcast %cst_4 : f32 to vector<8x8xf32>
    %6 = arith.maximumf %5, %4 : vector<8x8xf32>
    %7 = vector.broadcast %cst_5 : f32 to vector<8x8xf32>
    %8 = arith.minimumf %7, %6 : vector<8x8xf32>
    %9 = math.exp %8 : vector<8x8xf32>
    %c0_6 = arith.constant 0 : index
    %c0_7 = arith.constant 0 : index
    %10 = vector.load %arg7[%c0_6, %c0_7] : memref<8x8xf32, #tpu.memory_space<vmem>>, vector<8x8xf32>
    tpu.vector_store %arg7[%c0_6, %c0_7], %9 {strides = array<i32>} : memref<8x8xf32, #tpu.memory_space<vmem>>, vector<8x8xf32>,
    %11 = arith.extf %0 : vector<8x32xbf16> to vector<8x32xf32>
    %c0_8 = arith.constant 0 : index
    %c0_9 = arith.constant 0 : index
    %12 = vector.load %arg3[%c0_8, %c0_9] : memref<32x64xf32, #tpu.memory_space<vmem>>, vector<32x64xf32>
    %cst_10 = arith.constant dense<0.000000e+00> : vector<8x64xf32>
    %13 = tpu.matmul %11, %12, %cst_10 {dimension_numbers = #tpu.dot_dimension_numbers<[1], [0], [0], [1], [0, 0, 1, 1], [], []>, precision = #tpu.contract_precision<fp32>} : vector<8x32xf32>, vector<32x64xf32>, vector<8x64xf32> -> vector<8x64xf32>
    %c0_11 = arith.constant 0 : index
    %c0_12 = arith.constant 0 : index
    %14 = vector.load %arg4[%c0_11, %c0_12] : memref<1x64xf32, #tpu.memory_space<vmem>>, vector<1x64xf32>
    %15 = vector.broadcast %14 : vector<1x64xf32> to vector<8x64xf32>
    %16 = arith.addf %13, %15 : vector<8x64xf32>
    %cst_13 = arith.constant 0.000000e+00 : f32
    %17 = vector.broadcast %cst_13 : f32 to vector<8x64xf32>
    %18 = arith.maximumf %16, %17 : vector<8x64xf32>
    %c0_14 = arith.constant 0 : index
    %c0_15 = arith.constant 0 : index
    %19 = vector.load %arg5[%c0_14, %c0_15] : memref<1x64xf32, #tpu.memory_space<vmem>>, vector<1x64xf32>
    %20 = vector.broadcast %19 : vector<1x64xf32> to vector<8x64xf32>
    %21 = arith.mulf %18, %20 : vector<8x64xf32>
    %cst_16 = arith.constant dense<0.000000e+00> : vector<8xf32>
    %22 = vector.multi_reduction <add>, %21, %cst_16 [1] : vector<8x64xf32> to vector<8xf32>
    %23 = vector.shape_cast %22 : vector<8xf32> to vector<8x1xf32>
    %c0_17 = arith.constant 0 : index
    %c0_18 = arith.constant 0 : index
    %24 = vector.load %arg6[%c0_17, %c0_18] : memref<1x1xf32, #tpu.memory_space<vmem>>, vector<1x1xf32>
    %25 = vector.broadcast %24 : vector<1x1xf32> to vector<8x1xf32>
    %26 = arith.addf %23, %25 : vector<8x1xf32>
    %cst_19 = arith.constant -1.500000e+01 : f32
    %cst_20 = arith.constant 1.500000e+01 : f32
    %27 = vector.broadcast %cst_19 : f32 to vector<8x1xf32>
    %28 = arith.maximumf %27, %26 : vector<8x1xf32>
    %29 = vector.broadcast %cst_20 : f32 to vector<8x1xf32>
    %30 = arith.minimumf %29, %28 : vector<8x1xf32>
    %31 = math.exp %30 : vector<8x1xf32>
    %32 = vector.shape_cast %31 : vector<8x1xf32> to vector<8x1xf32>
    %33 = vector.broadcast %32 : vector<8x1xf32> to vector<8x8xf32>
    %c0_21 = arith.constant 0 : index
    %c0_22 = arith.constant 0 : index
    %34 = vector.load %arg8[%c0_21, %c0_22] : memref<8x8xf32, #tpu.memory_space<vmem>>, vector<8x8xf32>
    tpu.vector_store %arg8[%c0_21, %c0_22], %33 {strides = array<i32>} : memref<8x8xf32, #tpu.memory_space<vmem>>, vector<8x8xf32>,
    return
  }
  func.func @transform_0(%arg0: i32) -> (i32, i32) {
    %c0_i32 = arith.constant 0 : i32
    %c0_i32_0 = arith.constant 0 : i32
    return %arg0, %c0_i32 : i32, i32
  }
  func.func @transform_1(%arg0: i32) -> (i32, i32) {
    %c0_i32 = arith.constant 0 : i32
    %c0_i32_0 = arith.constant 0 : i32
    %c0_i32_1 = arith.constant 0 : i32
    return %c0_i32, %c0_i32_0 : i32, i32
  }
  func.func @transform_2(%arg0: i32) -> (i32, i32) {
    %c0_i32 = arith.constant 0 : i32
    %c0_i32_0 = arith.constant 0 : i32
    %c0_i32_1 = arith.constant 0 : i32
    return %c0_i32, %c0_i32_0 : i32, i32
  }
  func.func @transform_3(%arg0: i32) -> (i32, i32) {
    %c0_i32 = arith.constant 0 : i32
    %c0_i32_0 = arith.constant 0 : i32
    %c0_i32_1 = arith.constant 0 : i32
    return %c0_i32, %c0_i32_0 : i32, i32
  }
  func.func @transform_4(%arg0: i32) -> (i32, i32) {
    %c0_i32 = arith.constant 0 : i32
    %c0_i32_0 = arith.constant 0 : i32
    %c0_i32_1 = arith.constant 0 : i32
    return %c0_i32, %c0_i32_0 : i32, i32
  }
  func.func @transform_5(%arg0: i32) -> (i32, i32) {
    %c0_i32 = arith.constant 0 : i32
    %c0_i32_0 = arith.constant 0 : i32
    %c0_i32_1 = arith.constant 0 : i32
    return %c0_i32, %c0_i32_0 : i32, i32
  }
  func.func @transform_6(%arg0: i32) -> (i32, i32) {
    %c0_i32 = arith.constant 0 : i32
    %c0_i32_0 = arith.constant 0 : i32
    return %arg0, %c0_i32 : i32, i32
  }
  func.func @transform_7(%arg0: i32) -> (i32, i32) {
    %c0_i32 = arith.constant 0 : i32
    %c0_i32_0 = arith.constant 0 : i32
    return %arg0, %c0_i32 : i32, i32
  }
}

</mosaic_0001>

<llo_original>
// kernel: tpu_custom_call.1
$region0: #{tpu_custom_call.1}
  #allocation0 [shape = 'u32[]', space=smem, size = 0x4, offset = 0x4, fixed_abs, tag = 'smem constant byte address 0x4 - core index']
  #allocation1 [shape = 'u32[72,128]{1,0:T(1,128)}', space=vmem, size = 0x9000, scoped, tag = 'internal scratch']
  #allocation2 [shape = 'f32[1,1]{1,0:T(1,128)S(1)}', space=vmem, size = 0x200, scoped, tag = 'scoped memory for tpu_custom_call.1']
  %s0 = inlined_call_operand.vmem [shape: bf16[8,32], index: 0, kind: input, shape index: {}]
  %s1 = inlined_call_operand.vmem [shape: bf16[32,8], index: 1, kind: input, shape index: {}]
  %s2 = inlined_call_operand.hbm [shape: f32[32,64], index: 2, kind: input, shape index: {}]
  %s3 = inlined_call_operand.vmem [shape: f32[1,64], index: 3, kind: input, shape index: {}]
  %s4 = inlined_call_operand.vmem [shape: f32[1,64], index: 4, kind: input, shape index: {}]
  %s5 = inlined_call_operand.<no memory space> [shape: f32[1,1], index: 5, kind: input, shape index: {}]
  %s6 = inlined_call_operand.hbm [shape: f32[8,8], index: 6, kind: output, shape index: {0}]
  %s7 = inlined_call_operand.hbm [shape: f32[8,8], index: 7, kind: output, shape index: {1}]
  %8 = xla_tuple %s6, %s7
  %s9 = sld [smem:[#allocation0]]
  $region46: #{tpu_custom_call.1} parent=0
    _
  %s11 = ssub.s32 1, %s9
  %s12 = scalar_select 0, %s11, %s9
  %v13 = vstv %s5
  %14 = vst [vmem:[#allocation2] sm:$0x1] %v13
  $region1: #{tpu_custom_call.1} parent=0
    #allocation3 [shape = 'u8[16384]{0}', space=vmem, size = 0x4000, scoped, tag = 'input window, operand 2, single buffered']
    #allocation4 [shape = 's32[1]{0}', space=sflag, size = 0x4, scoped, tag = 'scoped memory for tpu_custom_call.1']
    #allocation5 [shape = 's32[1]{0}', space=sflag, size = 0x4, scoped, tag = 'scoped memory for tpu_custom_call.1']
    #allocation6 [shape = 'u8[4096]{0}', space=vmem, size = 0x1000, scoped, tag = 'output window, operand 0, single buffered']
    #allocation7 [shape = 'u8[4096]{0}', space=vmem, size = 0x1000, scoped, tag = 'output window, operand 1, single buffered']
    #allocation8 [shape = 's32[1]{0}', space=sflag, size = 0x4, scoped, tag = 'scoped memory for tpu_custom_call.1']
    %15 = vsyncpa [#allocation4], 0
    %16 = vsyncpa [#allocation5], 0
    %17 = vsyncpa [#allocation8], 0
    // Predicated region
    $region2: #{tpu_custom_call.1} parent=1 // pred_check
      _
    $region3: #{tpu_custom_call.1} parent=1 // pred_check_branch
      %19 = sbr.rel (0) target = $region5
    $region4: #{tpu_custom_call.1} parent=1 // pred_region
      _
    $region5: #{tpu_custom_call.1} parent=1 // pred_fallthru
      _
    // Predicated region
    $region6: #{tpu_custom_call.1} parent=1 // pred_check
      _
    $region7: #{tpu_custom_call.1} parent=1 // pred_check_branch
      %21 = sbr.rel (0) target = $region9
    $region8: #{tpu_custom_call.1} parent=1 // pred_region
      _
    $region9: #{tpu_custom_call.1} parent=1 // pred_fallthru
      _
    // Predicated region
    $region10: #{tpu_custom_call.1} parent=1 // pred_check
      _
    $region11: #{tpu_custom_call.1} parent=1 // pred_check_branch
      %23 = sbr.rel (0) target = $region13
    $region12: #{tpu_custom_call.1} parent=1 // pred_region
      %25 = vsyncadd [#allocation4], 0
      %s26 = sshll.u32 %s2, 4
      %s27 = int_to_ptr.hbm [resolvable:$true] %s26
      %s28 = sshll.u32 [#allocation3], 4
      %s29 = int_to_ptr.vmem [resolvable:$true] %s28
      %34 = dma.hbm_to_vmem [thread:$0]  %s27, 512, %s29, [#allocation4], 128, 128, 8
    $region13: #{tpu_custom_call.1} parent=1 // pred_fallthru
      _
    // Predicated region
    $region14: #{tpu_custom_call.1} parent=1 // pred_check
      _
    $region15: #{tpu_custom_call.1} parent=1 // pred_check_branch
      %36 = sbr.rel (0) target = $region17
    $region16: #{tpu_custom_call.1} parent=1 // pred_region
      _
    $region17: #{tpu_custom_call.1} parent=1 // pred_fallthru
      _
    // Predicated region
    $region18: #{tpu_custom_call.1} parent=1 // pred_check
      _
    $region19: #{tpu_custom_call.1} parent=1 // pred_check_branch
      %38 = sbr.rel (0) target = $region21
    $region20: #{tpu_custom_call.1} parent=1 // pred_region
      _
    $region21: #{tpu_custom_call.1} parent=1 // pred_fallthru
      _
    // Predicated region
    $region22: #{tpu_custom_call.1} parent=1 // pred_check
      _
    $region23: #{tpu_custom_call.1} parent=1 // pred_check_branch
      %40 = sbr.rel (0) target = $region25
    $region24: #{tpu_custom_call.1} parent=1 // pred_region
      _
    $region25: #{tpu_custom_call.1} parent=1 // pred_fallthru
      _
    // Predicated region
    $region26: #{tpu_custom_call.1} parent=1 // pred_check
      _
    $region27: #{tpu_custom_call.1} parent=1 // pred_check_branch
      %42 = sbr.rel (0) target = $region29
    $region28: #{tpu_custom_call.1} parent=1 // pred_region
      %44 = dma.done [#allocation4], 512
    $region29: #{tpu_custom_call.1} parent=1 // pred_fallthru
      _
    %v46 = vld [vmem:[%s0] sm:$0xf]
    %v47 = vld [vmem:[%s1] sm:$0xf]
    %v48 = vld [vmem:[%s1 + $0x4] sm:$0xf]
    %v49 = vld [vmem:[%s1 + $0x8] sm:$0xf]
    %v50 = vld [vmem:[%s1 + $0xc] sm:$0xf]
    %v55 = vunpack.c.l.b16 %v47
    %v56 = vunpack.c.l.b16 %v48
    %v57 = vunpack.c.l.b16 %v49
    %v58 = vunpack.c.l.b16 %v50
    %v59 = vpack.c.b16 %v56, %v55
    %v60 = vpack.c.b16 %v58, %v57
    %vm63 = vcmask 261120
    %v65 = vsel %vm63, %v46, 0
    %67 = vmatpush.bf16.msra.mxu0 0
    %68 = vmatpush.bf16.msra.mxu0 0
    %69 = vmatpush.bf16.msra.mxu0 0
    %70 = vmatpush.bf16.msra.mxu0 0
    %71 = vmatpush.bf16.msra.mxu0 0
    %72 = vmatpush.bf16.msra.mxu0 0
    %73 = vmatpush.bf16.msra.mxu0 %v60
    %74 = vmatpush.bf16.msra.mxu0 %v59
    %75 = vmatmul.bf16.gmra.mxu0 %v65
    %v76 = vpop.f32.mrf.mxu0
    %v77 = vadd.f32 0.0, %v76
    %v78 = vpop.f32.mrf.mxu0
    %79 = vdwg.mxu0
    %v80 = vmul.f32 %v77, 0.0625
    %v81 = vmax.f32 %v80, -15.0
    %v82 = vmin.f32 %v81, 15.0
    %v83 = vmul.f32 %v82, 1.442695
    %v84 = vpow.pop %v83
    %vm85 = vcmask 64512
    %86 = vst.msk [vmem:[#allocation6] sm:$0xff] %vm85, %v84
    %v87 = vunpack.c.l.bf16 %v46
    %v88 = vld [vmem:[#allocation3] sm:$0xff]
    %v89 = vld [vmem:[#allocation3 + $0x8] sm:$0xff]
    %v90 = vld [vmem:[#allocation3 + $0x10] sm:$0xff]
    %v91 = vld [vmem:[#allocation3 + $0x18] sm:$0xff]
    %v92 = vld [vmem:[%s3] sm:$0x1]
    %v94 = vperm.slane %v92, 0
    %v97 = vsel %vm63, %v87, 0
    %99 = vmatpush.msra.mxu0 0.0
    %100 = vmatpush.msra.mxu0 0.0
    %101 = vmatpush.msra.mxu0 0.0
    %102 = vmatpush.msra.mxu0 0.0
    %103 = vmatpush.msra.mxu0 0.0
    %104 = vmatpush.msra.mxu0 0.0
    %105 = vmatpush.msra.mxu0 0.0
    %106 = vmatpush.msra.mxu0 0.0
    %107 = vmatpush.msra.mxu0 0.0
    %108 = vmatpush.msra.mxu0 0.0
    %109 = vmatpush.msra.mxu0 0.0
    %110 = vmatpush.msra.mxu0 0.0
    %v111 = vand.u32 %v91, 4294901760
    %112 = vmatpush.msra.mxu0 %v111
    %v113 = vand.u32 %v90, 4294901760
    %114 = vmatpush.msra.mxu0 %v113
    %v115 = vand.u32 %v89, 4294901760
    %116 = vmatpush.msra.mxu0 %v115
    %v117 = vand.u32 %v88, 4294901760
    %118 = vmatpush.msra.mxu0 %v117
    %v119 = vand.u32 %v97, 4294901760
    %v120 = vsub.f32 %v97, %v119
    %v121 = vand.u32 %v120, 4294901760
    %v122 = vsub.f32 %v120, %v121
    %v123 = vand.u32 %v122, 4294901760
    %124 = vmatmul.f32.gmra.mxu0 %v123
    %v125 = vpop.f32.mrf.mxu0
    %v126 = vadd.f32 %v94, %v125
    %127 = vdwg.mxu0
    %128 = vmatpush.msra.mxu0 0.0
    %129 = vmatpush.msra.mxu0 0.0
    %130 = vmatpush.msra.mxu0 0.0
    %131 = vmatpush.msra.mxu0 0.0
    %132 = vmatpush.msra.mxu0 0.0
    %133 = vmatpush.msra.mxu0 0.0
    %134 = vmatpush.msra.mxu0 0.0
    %135 = vmatpush.msra.mxu0 0.0
    %136 = vmatpush.msra.mxu0 0.0
    %137 = vmatpush.msra.mxu0 0.0
    %138 = vmatpush.msra.mxu0 0.0
    %139 = vmatpush.msra.mxu0 0.0
    %v140 = vand.u32 %v91, 4294901760
    %v141 = vsub.f32 %v91, %v140
    %v142 = vand.u32 %v141, 4294901760
    %v143 = vsub.f32 %v141, %v142
    %v144 = vand.u32 %v143, 4294901760
    %145 = vmatpush.msra.mxu0 %v144
    %v146 = vand.u32 %v90, 4294901760
    %v147 = vsub.f32 %v90, %v146
    %v148 = vand.u32 %v147, 4294901760
    %v149 = vsub.f32 %v147, %v148
    %v150 = vand.u32 %v149, 4294901760
    %151 = vmatpush.msra.mxu0 %v150
    %v152 = vand.u32 %v89, 4294901760
    %v153 = vsub.f32 %v89, %v152
    %v154 = vand.u32 %v153, 4294901760
    %v155 = vsub.f32 %v153, %v154
    %v156 = vand.u32 %v155, 4294901760
    %157 = vmatpush.msra.mxu0 %v156
    %v158 = vand.u32 %v88, 4294901760
    %v159 = vsub.f32 %v88, %v158
    %v160 = vand.u32 %v159, 4294901760
    %v161 = vsub.f32 %v159, %v160
    %v162 = vand.u32 %v161, 4294901760
    %163 = vmatpush.msra.mxu0 %v162
    %v164 = vand.u32 %v97, 4294901760
    %165 = vmatmul.f32.gmra.mxu0 %v164
    %v166 = vpop.f32.mrf.mxu0
    %v167 = vadd.f32 %v126, %v166
    %168 = vdwg.mxu0
    %169 = vmatpush.msra.mxu0 0.0
    %170 = vmatpush.msra.mxu0 0.0
    %171 = vmatpush.msra.mxu0 0.0
    %172 = vmatpush.msra.mxu0 0.0
    %173 = vmatpush.msra.mxu0 0.0
    %174 = vmatpush.msra.mxu0 0.0
    %175 = vmatpush.msra.mxu0 0.0
    %176 = vmatpush.msra.mxu0 0.0
    %177 = vmatpush.msra.mxu0 0.0
    %178 = vmatpush.msra.mxu0 0.0
    %179 = vmatpush.msra.mxu0 0.0
    %180 = vmatpush.msra.mxu0 0.0
    %v181 = vand.u32 %v91, 4294901760
    %v182 = vsub.f32 %v91, %v181
    %183 = vmatpush.msra.mxu0 %v182
    %v184 = vand.u32 %v90, 4294901760
    %v185 = vsub.f32 %v90, %v184
    %186 = vmatpush.msra.mxu0 %v185
    %v187 = vand.u32 %v89, 4294901760
    %v188 = vsub.f32 %v89, %v187
    %189 = vmatpush.msra.mxu0 %v188
    %v190 = vand.u32 %v88, 4294901760
    %v191 = vsub.f32 %v88, %v190
    %192 = vmatpush.msra.mxu0 %v191
    %v193 = vand.u32 %v97, 4294901760
    %v194 = vsub.f32 %v97, %v193
    %195 = vmatmul.f32.gmra.mxu0 %v194
    %v196 = vpop.f32.mrf.mxu0
    %v197 = vadd.f32 %v167, %v196
    %198 = vdwg.mxu0
    %199 = vmatpush.msra.mxu0 0.0
    %200 = vmatpush.msra.mxu0 0.0
    %201 = vmatpush.msra.mxu0 0.0
    %202 = vmatpush.msra.mxu0 0.0
    %203 = vmatpush.msra.mxu0 0.0
    %204 = vmatpush.msra.mxu0 0.0
    %205 = vmatpush.msra.mxu0 0.0
    %206 = vmatpush.msra.mxu0 0.0
    %207 = vmatpush.msra.mxu0 0.0
    %208 = vmatpush.msra.mxu0 0.0
    %209 = vmatpush.msra.mxu0 0.0
    %210 = vmatpush.msra.mxu0 0.0
    %v211 = vand.u32 %v91, 4294901760
    %212 = vmatpush.msra.mxu0 %v211
    %v213 = vand.u32 %v90, 4294901760
    %214 = vmatpush.msra.mxu0 %v213
    %v215 = vand.u32 %v89, 4294901760
    %216 = vmatpush.msra.mxu0 %v215
    %v217 = vand.u32 %v88, 4294901760
    %218 = vmatpush.msra.mxu0 %v217
    %v219 = vand.u32 %v97, 4294901760
    %v220 = vsub.f32 %v97, %v219
    %v221 = vand.u32 %v220, 4294901760
    %222 = vmatmul.f32.gmra.mxu0 %v221
    %v223 = vpop.f32.mrf.mxu0
    %v224 = vadd.f32 %v197, %v223
    %225 = vdwg.mxu0
    %226 = vmatpush.msra.mxu0 0.0
    %227 = vmatpush.msra.mxu0 0.0
    %228 = vmatpush.msra.mxu0 0.0
    %229 = vmatpush.msra.mxu0 0.0
    %230 = vmatpush.msra.mxu0 0.0
    %231 = vmatpush.msra.mxu0 0.0
    %232 = vmatpush.msra.mxu0 0.0
    %233 = vmatpush.msra.mxu0 0.0
    %234 = vmatpush.msra.mxu0 0.0
    %235 = vmatpush.msra.mxu0 0.0
    %236 = vmatpush.msra.mxu0 0.0
    %237 = vmatpush.msra.mxu0 0.0
    %v238 = vand.u32 %v91, 4294901760
    %v239 = vsub.f32 %v91, %v238
    %v240 = vand.u32 %v239, 4294901760
    %241 = vmatpush.msra.mxu0 %v240
    %v242 = vand.u32 %v90, 4294901760
    %v243 = vsub.f32 %v90, %v242
    %v244 = vand.u32 %v243, 4294901760
    %245 = vmatpush.msra.mxu0 %v244
    %v246 = vand.u32 %v89, 4294901760
    %v247 = vsub.f32 %v89, %v246
    %v248 = vand.u32 %v247, 4294901760
    %249 = vmatpush.msra.mxu0 %v248
    %v250 = vand.u32 %v88, 4294901760
    %v251 = vsub.f32 %v88, %v250
    %v252 = vand.u32 %v251, 4294901760
    %253 = vmatpush.msra.mxu0 %v252
    %v254 = vand.u32 %v97, 4294901760
    %255 = vmatmul.f32.gmra.mxu0 %v254
    %v256 = vpop.f32.mrf.mxu0
    %v257 = vadd.f32 %v224, %v256
    %258 = vdwg.mxu0
    %259 = vmatpush.msra.mxu0 0.0
    %260 = vmatpush.msra.mxu0 0.0
    %261 = vmatpush.msra.mxu0 0.0
    %262 = vmatpush.msra.mxu0 0.0
    %263 = vmatpush.msra.mxu0 0.0
    %264 = vmatpush.msra.mxu0 0.0
    %265 = vmatpush.msra.mxu0 0.0
    %266 = vmatpush.msra.mxu0 0.0
    %267 = vmatpush.msra.mxu0 0.0
    %268 = vmatpush.msra.mxu0 0.0
    %269 = vmatpush.msra.mxu0 0.0
    %270 = vmatpush.msra.mxu0 0.0
    %v271 = vand.u32 %v91, 4294901760
    %272 = vmatpush.msra.mxu0 %v271
    %v273 = vand.u32 %v90, 4294901760
    %274 = vmatpush.msra.mxu0 %v273
    %v275 = vand.u32 %v89, 4294901760
    %276 = vmatpush.msra.mxu0 %v275
    %v277 = vand.u32 %v88, 4294901760
    %278 = vmatpush.msra.mxu0 %v277
    %v279 = vand.u32 %v97, 4294901760
    %280 = vmatmul.f32.gmra.mxu0 %v279
    %v281 = vpop.f32.mrf.mxu0
    %v282 = vadd.f32 %v257, %v281
    %283 = vdwg.mxu0
    %v284 = vmax.f32 %v282, 0.0
    %v285 = vld [vmem:[%s4] sm:$0x1]
    %v287 = vperm.slane %v285, 0
    %v289 = vmul.f32 %v284, %v287
    %vm290 = vcmask 523264
    %v291 = vsel %vm290, %v289, 0.0
    %292 = vadd.xlane.f32.xlu0 %v291
    %v293 = vpop.xlane.xlu0 %292
    %v294 = vld [vmem:[#allocation2] sm:$0x1]
    %v296 = vperm.slane %v294, 0
    %v298 = vadd.f32 %v293, %v296
    %v299 = vmax.f32 %v298, -15.0
    %v300 = vmin.f32 %v299, 15.0
    %v301 = vmul.f32 %v300, 1.442695
    %v302 = vpow.pop %v301
    %304 = vset.pattern.permute.xlu0 0
    %305 = vperm.xlu0 %304, %v302
    %v306 = vpop.permute.xlu0 %305
    %308 = vst.msk [vmem:[#allocation7] sm:$0xff] %vm85, %v306
    // Predicated region
    $region30: #{tpu_custom_call.1} parent=1 // pred_check
      _
    $region31: #{tpu_custom_call.1} parent=1 // pred_check_branch
      %310 = sbr.rel (0) target = $region33
    $region32: #{tpu_custom_call.1} parent=1 // pred_region
      %312 = vsyncadd [#allocation5], 0
      %s314 = sshll.u32 [#allocation6], 4
      %s315 = int_to_ptr.vmem [resolvable:$true] %s314
      %s316 = sshll.u32 %s6, 4
      %s317 = int_to_ptr.hbm [resolvable:$true] %s316
      %319 = dma.vmem_to_hbm [thread:$0]  %s315, 128, %s317, [#allocation5]
    $region33: #{tpu_custom_call.1} parent=1 // pred_fallthru
      _
    // Predicated region
    $region34: #{tpu_custom_call.1} parent=1 // pred_check
      _
    $region35: #{tpu_custom_call.1} parent=1 // pred_check_branch
      %321 = sbr.rel (0) target = $region37
    $region36: #{tpu_custom_call.1} parent=1 // pred_region
      %323 = vsyncadd [#allocation8], 0
      %s325 = sshll.u32 [#allocation7], 4
      %s326 = int_to_ptr.vmem [resolvable:$true] %s325
      %s327 = sshll.u32 %s7, 4
      %s328 = int_to_ptr.hbm [resolvable:$true] %s327
      %330 = dma.vmem_to_hbm [thread:$0]  %s326, 128, %s328, [#allocation8]
    $region37: #{tpu_custom_call.1} parent=1 // pred_fallthru
      _
    // Predicated region
    $region38: #{tpu_custom_call.1} parent=1 // pred_check
      _
    $region39: #{tpu_custom_call.1} parent=1 // pred_check_branch
      %332 = sbr.rel (0) target = $region41
    $region40: #{tpu_custom_call.1} parent=1 // pred_region
      %334 = dma.done [#allocation5], 128
    $region41: #{tpu_custom_call.1} parent=1 // pred_fallthru
      _
    // Predicated region
    $region42: #{tpu_custom_call.1} parent=1 // pred_check
      _
    $region43: #{tpu_custom_call.1} parent=1 // pred_check_branch
      %336 = sbr.rel (0) target = $region45
    $region44: #{tpu_custom_call.1} parent=1 // pred_region
      %338 = dma.done [#allocation8], 128
    $region45: #{tpu_custom_call.1} parent=1 // pred_fallthru
      _
    %339 = vsyncpa [#allocation4], 1
    %340 = vsyncpa [#allocation5], 1
    %341 = vsyncpa [#allocation8], 1

</llo_original>
